<compile_context>
chip_gen: v7x
topology: tpu7x:2x2x1
jax: 0.10.0
libtpu: 0.0.40
codegen_flags: <defaults>
</compile_context>

<pallas_src>
import jax
import jax.numpy as jnp
from jax.experimental import pallas as pl
from jax.experimental.pallas import tpu as pltpu


def reward_criterion_kernel(lp_ref, rew_ref, seq_ref, num_ref, den_ref):
    # lp_ref: (TB, S)  f32/bf16 ; rew_ref: (TB, S) or (TB, 1) f32/bf16
    # seq_ref: (TB, S) i32
    # num_ref / den_ref: (1, 1, S) f32 per-block partial sums (lane-dense out).
    lp = lp_ref[...].astype(jnp.float32)              # (TB, S)
    rw = rew_ref[...].astype(jnp.float32)             # (TB, S) or (TB, 1)
    ind = (seq_ref[...] > 0).astype(jnp.float32)      # (TB, S)

    tb, s = ind.shape

    # mask[:, 0] = 1 ; mask[:, t] = ind[:, t-1] for t >= 1.
    # roll rides the XLU slot; lane 0 (the wrapped element) is overwritten.
    shifted = pltpu.roll(ind, shift=1, axis=1)
    lane = jax.lax.broadcasted_iota(jnp.int32, (tb, s), 1)
    mask = jnp.where(lane == 0, jnp.float32(1.0), shifted)

    contrib = -lp * rw                                 # broadcasts if rw is (TB,1)

    # Sublane-only reduce per block; the cheap cross-lane reduce is deferred
    # to a tiny JAX op after the kernel.
    num_ref[...] = jnp.sum(contrib * mask, axis=0).reshape(1, 1, s)
    den_ref[...] = jnp.sum(mask, axis=0).reshape(1, 1, s)


def _pick_block_rows(batch, sublane, per_row_bytes, vmem_budget_bytes,
                     override=None):
    """Largest row tile that (a) divides batch, (b) is a multiple of `sublane`
    (or the full batch), and (c) keeps double-buffered input tiles within the
    VMEM budget."""
    if override is not None:
        if override >= batch:
            return batch
        if batch % override == 0 and override % sublane == 0:
            return override
        # invalid override -> fall through to automatic sizing
    target = max(sublane, vmem_budget_bytes // max(per_row_bytes, 1))
    if batch <= target:
        return batch
    for cand in range(min(target, batch), sublane - 1, -1):
        if batch % cand == 0 and cand % sublane == 0:
            return cand
    return batch  # fall back to a single full-batch block


def reward_criterion(sample_logprobs, seq, reward, *,
                     block_rows=None, vmem_budget_bytes=40 << 20):
    """loss = sum(-logprobs * reward * mask) / sum(mask), mask = shifted (seq>0).

    `sample_logprobs`: (B, S), f32 or bf16 (streamed in native width).
    `seq`:             (B, S), integer token ids (0 = pad).
    `reward`:          (B, S) per-token, or (B,) / (B, 1) per-sequence.
    """
    assert sample_logprobs.ndim == 2, sample_logprobs.shape
    B, S = sample_logprobs.shape

    lp = jnp.asarray(sample_logprobs)                     # keep native dtype
    sq = jnp.asarray(seq).astype(jnp.int32).reshape(B, S)
    rw = jnp.asarray(reward)                              # keep native dtype
    per_seq = (rw.ndim == 1) or (rw.ndim == 2 and rw.shape[1] == 1 and S != 1)
    if per_seq:
        rw = rw.reshape(B, 1)
    else:
        rw = rw.reshape(B, S)
    rw_cols = 1 if per_seq else S

    lp_b = jnp.dtype(lp.dtype).itemsize
    rw_b = jnp.dtype(rw.dtype).itemsize
    sublane = 16 if min(lp_b, rw_b) < 4 else 8            # packed sublanes for bf16

    # Double-buffered bytes per row of batch held live in VMEM.
    per_row_bytes = 2 * (S * lp_b + rw_cols * rw_b + S * 4)
    tb = _pick_block_rows(B, sublane, per_row_bytes, vmem_budget_bytes,
                          override=block_rows)
    nblocks = B // tb if B % tb == 0 else 1
    if B % tb != 0:
        tb = B
        nblocks = 1

    cost = pl.CostEstimate(
        flops=6 * B * S,
        transcendentals=0,
        bytes_accessed=B * S * (lp_b + 4) + B * rw_cols * rw_b
                       + 2 * nblocks * S * 4,
    )

    grid_spec = pltpu.PrefetchScalarGridSpec(
        num_scalar_prefetch=0,
        grid=(nblocks,),
        in_specs=[
            pl.BlockSpec((tb, S), lambda i: (i, 0)),        # sample_logprobs tile
            pl.BlockSpec((tb, rw_cols), lambda i: (i, 0)),  # reward tile (maybe (tb,1))
            pl.BlockSpec((tb, S), lambda i: (i, 0)),        # seq tile
        ],
        out_specs=[
            pl.BlockSpec((1, 1, S), lambda i: (i, 0, 0)),   # per-block numerator partial
            pl.BlockSpec((1, 1, S), lambda i: (i, 0, 0)),   # per-block mask-count partial
        ],
    )

    num, den = pl.pallas_call(
        reward_criterion_kernel,
        out_shape=(jax.ShapeDtypeStruct((nblocks, 1, S), jnp.float32),
                   jax.ShapeDtypeStruct((nblocks, 1, S), jnp.float32)),
        grid_spec=grid_spec,
        compiler_params=pltpu.CompilerParams(
            # independent per-block partials -> batch grid can shard across
            # both v7x TensorCores; no serialized accumulator.
            dimension_semantics=("parallel",),
            vmem_limit_bytes=48 * 1024 * 1024),
        cost_estimate=cost,
    )(lp, rw, sq)

    # Tiny deferred lane reduce + divide (a single fused XLA op).
    return jnp.sum(num) / jnp.sum(den)


if __name__ == "__main__":
    key = jax.random.PRNGKey(0)
    k_lp, k_rw, k_seq, k_rw2 = jax.random.split(key, 4)

    B, S = 16, 128
    # log-probs of sampled tokens (<= 0), per-token rewards, sampled token ids
    sample_logprobs = -jnp.abs(jax.random.normal(k_lp, (B, S), dtype=jnp.float32))
    reward = jax.random.normal(k_rw, (B, S), dtype=jnp.float32)
    seq = jax.random.randint(k_seq, (B, S), 0, 5, dtype=jnp.int32)  # 0 = pad

    # --- test 1: exact PyTorch spec (f32, per-token reward), multi-block grid ---
    loss = reward_criterion(sample_logprobs, seq, reward, block_rows=8)
    loss = jax.block_until_ready(loss)

    mask = (seq > 0).astype(jnp.float32)
    mask = jnp.concatenate([jnp.ones((B, 1), jnp.float32), mask[:, :-1]], axis=1)
    ref = jnp.sum(-sample_logprobs * reward * mask) / jnp.sum(mask)

    assert loss.shape == (), loss.shape
    assert jnp.allclose(loss, ref, atol=1e-5, rtol=1e-5), (loss, ref)

    # --- test 2: bf16 inputs + per-sequence reward (reduced-HBM-traffic path) ---
    lp_bf16 = sample_logprobs.astype(jnp.bfloat16)
    rw_perseq = jax.random.normal(k_rw2, (B,), dtype=jnp.bfloat16)
    loss2 = reward_criterion(lp_bf16, seq, rw_perseq, block_rows=16)
    loss2 = jax.block_until_ready(loss2)

    lp_f = lp_bf16.astype(jnp.float32)
    rw_f = jnp.broadcast_to(rw_perseq.astype(jnp.float32)[:, None], (B, S))
    ref2 = jnp.sum(-lp_f * rw_f * mask) / jnp.sum(mask)
    assert jnp.allclose(loss2, ref2, atol=1e-4, rtol=1e-4), (loss2, ref2)

    print("KERNEL_OK")
</pallas_src>

<mosaic_0001>
module attributes {stable_mosaic.version = 11 : i64} {
  func.func @reward_criterion_kernel(%arg0: i32, %arg1: memref<8x128xf32, #tpu.memory_space<vmem>>, %arg2: memref<8x128xf32, #tpu.memory_space<vmem>>, %arg3: memref<8x128xi32, #tpu.memory_space<vmem>>, %arg4: memref<1x1x128xf32, #tpu.memory_space<vmem>>, %arg5: memref<1x1x128xf32, #tpu.memory_space<vmem>>) attributes {dimension_semantics = [#tpu.dimension_semantics<parallel>], iteration_bounds = array<i64: 2>, scalar_prefetch = 0 : i64, scratch_operands = 0 : i64, tpu.core_type = #tpu.core_type<tc>, window_params = [{transform_indices = @transform_0, window_bounds = array<i64: 8, 128>}, {transform_indices = @transform_1, window_bounds = array<i64: 8, 128>}, {transform_indices = @transform_2, window_bounds = array<i64: 8, 128>}, {transform_indices = @transform_3, window_bounds = array<i64: 1, 1, 128>}, {transform_indices = @transform_4, window_bounds = array<i64: 1, 1, 128>}]} {
    %c0 = arith.constant 0 : index
    %c0_0 = arith.constant 0 : index
    %0 = vector.load %arg1[%c0, %c0_0] : memref<8x128xf32, #tpu.memory_space<vmem>>, vector<8x128xf32>
    %c0_1 = arith.constant 0 : index
    %c0_2 = arith.constant 0 : index
    %1 = vector.load %arg2[%c0_1, %c0_2] : memref<8x128xf32, #tpu.memory_space<vmem>>, vector<8x128xf32>
    %c0_3 = arith.constant 0 : index
    %c0_4 = arith.constant 0 : index
    %2 = vector.load %arg3[%c0_3, %c0_4] : memref<8x128xi32, #tpu.memory_space<vmem>>, vector<8x128xi32>
    %c0_i32 = arith.constant 0 : i32
    %3 = vector.broadcast %c0_i32 : i32 to vector<8x128xi32>
    %4 = arith.cmpi sgt, %2, %3 : vector<8x128xi32>
    %5 = arith.extui %4 : vector<8x128xi1> to vector<8x128xi32>
    %6 = arith.sitofp %5 : vector<8x128xi32> to vector<8x128xf32>
    %c1_i32 = arith.constant 1 : i32
    %7 = tpu.dynamic_rotate %6 by %c1_i32 dim 1 : vector<8x128xf32>, i32 -> vector<8x128xf32>
    %8 = tpu.iota {dimensions = array<i32: 1>} : vector<8x128xi32>
    %c0_i32_5 = arith.constant 0 : i32
    %9 = vector.broadcast %c0_i32_5 : i32 to vector<8x128xi32>
    %10 = arith.cmpi eq, %8, %9 : vector<8x128xi32>
    %cst = arith.constant 1.000000e+00 : f32
    %11 = vector.broadcast %cst : f32 to vector<8x128xf32>
    %12 = arith.select %10, %11, %7 : vector<8x128xi1>, vector<8x128xf32>
    %cst_6 = arith.constant 0.000000e+00 : f32
    %13 = vector.broadcast %cst_6 : f32 to vector<8x128xf32>
    %14 = arith.subf %13, %0 : vector<8x128xf32>
    %15 = arith.mulf %14, %1 : vector<8x128xf32>
    %16 = arith.mulf %15, %12 : vector<8x128xf32>
    %cst_7 = arith.constant dense<0.000000e+00> : vector<128xf32>
    %17 = vector.multi_reduction <add>, %16, %cst_7 [0] : vector<8x128xf32> to vector<128xf32>
    %18 = vector.shape_cast %17 : vector<128xf32> to vector<1x1x128xf32>
    %c0_8 = arith.constant 0 : index
    %c0_9 = arith.constant 0 : index
    %c0_10 = arith.constant 0 : index
    %19 = vector.load %arg4[%c0_8, %c0_9, %c0_10] : memref<1x1x128xf32, #tpu.memory_space<vmem>>, vector<1x1x128xf32>
    tpu.vector_store %arg4[%c0_8, %c0_9, %c0_10], %18 {strides = array<i32>} : memref<1x1x128xf32, #tpu.memory_space<vmem>>, vector<1x1x128xf32>,
    %cst_11 = arith.constant dense<0.000000e+00> : vector<128xf32>
    %20 = vector.multi_reduction <add>, %12, %cst_11 [0] : vector<8x128xf32> to vector<128xf32>
    %21 = vector.shape_cast %20 : vector<128xf32> to vector<1x1x128xf32>
    %c0_12 = arith.constant 0 : index
    %c0_13 = arith.constant 0 : index
    %c0_14 = arith.constant 0 : index
    %22 = vector.load %arg5[%c0_12, %c0_13, %c0_14] : memref<1x1x128xf32, #tpu.memory_space<vmem>>, vector<1x1x128xf32>
    tpu.vector_store %arg5[%c0_12, %c0_13, %c0_14], %21 {strides = array<i32>} : memref<1x1x128xf32, #tpu.memory_space<vmem>>, vector<1x1x128xf32>,
    return
  }
  func.func @transform_0(%arg0: i32) -> (i32, i32) {
    %c0_i32 = arith.constant 0 : i32
    %c0_i32_0 = arith.constant 0 : i32
    return %arg0, %c0_i32 : i32, i32
  }
  func.func @transform_1(%arg0: i32) -> (i32, i32) {
    %c0_i32 = arith.constant 0 : i32
    %c0_i32_0 = arith.constant 0 : i32
    return %arg0, %c0_i32 : i32, i32
  }
  func.func @transform_2(%arg0: i32) -> (i32, i32) {
    %c0_i32 = arith.constant 0 : i32
    %c0_i32_0 = arith.constant 0 : i32
    return %arg0, %c0_i32 : i32, i32
  }
  func.func @transform_3(%arg0: i32) -> (i32, i32, i32) {
    %c0_i32 = arith.constant 0 : i32
    %c0_i32_0 = arith.constant 0 : i32
    %c0_i32_1 = arith.constant 0 : i32
    return %arg0, %c0_i32, %c0_i32_0 : i32, i32, i32
  }
  func.func @transform_4(%arg0: i32) -> (i32, i32, i32) {
    %c0_i32 = arith.constant 0 : i32
    %c0_i32_0 = arith.constant 0 : i32
    %c0_i32_1 = arith.constant 0 : i32
    return %arg0, %c0_i32, %c0_i32_0 : i32, i32, i32
  }
}

</mosaic_0001>

<llo_original>
// kernel: tpu_custom_call.1
$region0: #{tpu_custom_call.1}
  #allocation0 [shape = 'u32[]', space=smem, size = 0x4, offset = 0x4, fixed_abs, tag = 'smem constant byte address 0x4 - core index']
  #allocation1 [shape = 'u32[144,128]{1,0:T(1,128)}', space=vmem, size = 0x12000, scoped, tag = 'internal scratch']
  %s0 = inlined_call_operand.hbm [shape: f32[16,128], index: 0, kind: input, shape index: {}]
  %s1 = inlined_call_operand.hbm [shape: f32[16,128], index: 1, kind: input, shape index: {}]
  %s2 = inlined_call_operand.hbm [shape: s32[16,128], index: 2, kind: input, shape index: {}]
  %s3 = inlined_call_operand.hbm [shape: f32[2,1,128], index: 3, kind: output, shape index: {0}]
  %s4 = inlined_call_operand.hbm [shape: f32[2,1,128], index: 4, kind: output, shape index: {1}]
  %5 = xla_tuple %s3, %s4
  %s6 = sld [smem:[#allocation0]]
  $region65: #{tpu_custom_call.1} parent=0
    _
  %s8 = ssub.s32 1, %s6
  %s9 = scalar_select 0, %s8, %s6
  $region1: #{tpu_custom_call.1} parent=0
    #allocation2 [shape = 'u8[8192]{0}', space=vmem, size = 0x2000, scoped, tag = 'input window, operand 0']
    #allocation3 [shape = 's32[2]{0}', space=sflag, size = 0x8, scoped, tag = 'scoped memory for tpu_custom_call.1']
    #allocation4 [shape = 's32[2]{0}', space=sflag, size = 0x8, scoped, tag = 'scoped memory for tpu_custom_call.1']
    #allocation5 [shape = 'u8[8192]{0}', space=vmem, size = 0x2000, scoped, tag = 'input window, operand 1']
    #allocation6 [shape = 's32[2]{0}', space=sflag, size = 0x8, scoped, tag = 'scoped memory for tpu_custom_call.1']
    #allocation7 [shape = 'u8[8192]{0}', space=vmem, size = 0x2000, scoped, tag = 'input window, operand 2']
    #allocation8 [shape = 'u8[1024]{0}', space=vmem, size = 0x400, scoped, tag = 'output window, operand 0']
    #allocation9 [shape = 'u8[1024]{0}', space=vmem, size = 0x400, scoped, tag = 'output window, operand 1']
    #allocation10 [shape = 's32[2]{0}', space=sflag, size = 0x8, scoped, tag = 'scoped memory for tpu_custom_call.1']
    %10 = vsyncpa [#allocation3], 0
    %s11 = scalar_lea.sflag [#allocation3], 1
    %12 = vsyncpa %s11, 0
    %13 = vsyncpa [#allocation6], 0
    %s14 = scalar_lea.sflag [#allocation6], 1
    %15 = vsyncpa %s14, 0
    %16 = vsyncpa [#allocation4], 0
    %s17 = scalar_lea.sflag [#allocation4], 1
    %18 = vsyncpa %s17, 0
    %19 = vsyncpa [#allocation10], 0
    %s20 = scalar_lea.sflag [#allocation10], 1
    %21 = vsyncpa %s20, 0
    loop: start=0, step=1, limit=4
    $region2: #{tpu_custom_call.1} parent=1 // loop_pre_header
      _
    $region3: #{tpu_custom_call.1} parent=1 // loop_header
      %s23 = sphi 0, %s27
      %p24 = scmp.ge.s32.totalorder %s23, 4
      %s33 = sphi 0, %s35
      %s36 = sphi 0, %s33
      %s37 = sphi 0, %s36
      %s53 = sphi 0, %s37
      %s59 = sphi 0, %s61
      %s62 = sphi 0, %s59
      %s63 = sphi 0, %s62
      %s79 = sphi 0, %s63
      %s85 = sphi 0, %s87
      %s88 = sphi 0, %s85
      %s89 = sphi 0, %s88
      %s105 = sphi 0, %s89
      %s111 = sphi 0, %s113
      %s114 = sphi 0, %s111
      %s115 = sphi 0, %s114
      %s131 = sphi 0, %s115
      %s137 = sphi 0, %s139
      %s140 = sphi 0, %s137
      %s141 = sphi 0, %s140
      %s157 = sphi 0, %s141
    $region4: #{tpu_custom_call.1} parent=1 // loop_header_branch
      %26 = sbr.rel (%p24) target = $region8
    $region5: #{tpu_custom_call.1} parent=1 // loop_body
      %s28 = ssub.s32 %s23, 1
      %s29 = ssub.s32 %s23, 2
      %s30 = sadd.s32 %s23, 1
      %s31 = ssub.s32 %s23, %s30
      %p32 = scmp.eq.s32.totalorder %s31, 0
      %s34 = sadd.s32 %s33, 1
      %s35 = scalar_select %p32, %s33, %s34
      %p38 = pneg %p32
      %p39 = scmp.eq.s32.totalorder %s23, 1
      %p40 = por %p38, %p39
      %p41 = scmp.ne.s32.totalorder %s33, %s36
      %p42 = scmp.eq.s32.totalorder %s23, 0
      %p43 = por %p41, %p42
      %p44 = scmp.ne.s32.totalorder %s33, %s36
      %p45 = scmp.eq.s32.totalorder %s28, 1
      %p46 = por %p44, %p45
      %p47 = scmp.ne.s32.totalorder %s36, %s37
      %p48 = scmp.eq.s32.totalorder %s28, 0
      %p49 = por %p47, %p48
      %p50 = scmp.ne.s32.totalorder %s36, %s37
      %p51 = scmp.eq.s32.totalorder %s29, 1
      %p52 = por %p50, %p51
      %p54 = scmp.ne.s32.totalorder %s37, %s53
      %p55 = scmp.eq.s32.totalorder %s29, 0
      %p56 = por %p54, %p55
      %s57 = ssub.s32 %s23, %s30
      %p58 = scmp.eq.s32.totalorder %s57, 0
      %s60 = sadd.s32 %s59, 1
      %s61 = scalar_select %p58, %s59, %s60
      %p64 = pneg %p58
      %p65 = scmp.eq.s32.totalorder %s23, 1
      %p66 = por %p64, %p65
      %p67 = scmp.ne.s32.totalorder %s59, %s62
      %p68 = scmp.eq.s32.totalorder %s23, 0
      %p69 = por %p67, %p68
      %p70 = scmp.ne.s32.totalorder %s59, %s62
      %p71 = scmp.eq.s32.totalorder %s28, 1
      %p72 = por %p70, %p71
      %p73 = scmp.ne.s32.totalorder %s62, %s63
      %p74 = scmp.eq.s32.totalorder %s28, 0
      %p75 = por %p73, %p74
      %p76 = scmp.ne.s32.totalorder %s62, %s63
      %p77 = scmp.eq.s32.totalorder %s29, 1
      %p78 = por %p76, %p77
      %p80 = scmp.ne.s32.totalorder %s63, %s79
      %p81 = scmp.eq.s32.totalorder %s29, 0
      %p82 = por %p80, %p81
      %s83 = ssub.s32 %s23, %s30
      %p84 = scmp.eq.s32.totalorder %s83, 0
      %s86 = sadd.s32 %s85, 1
      %s87 = scalar_select %p84, %s85, %s86
      %p90 = pneg %p84
      %p91 = scmp.eq.s32.totalorder %s23, 1
      %p92 = por %p90, %p91
      %p93 = scmp.ne.s32.totalorder %s85, %s88
      %p94 = scmp.eq.s32.totalorder %s23, 0
      %p95 = por %p93, %p94
      %p96 = scmp.ne.s32.totalorder %s85, %s88
      %p97 = scmp.eq.s32.totalorder %s28, 1
      %p98 = por %p96, %p97
      %p99 = scmp.ne.s32.totalorder %s88, %s89
      %p100 = scmp.eq.s32.totalorder %s28, 0
      %p101 = por %p99, %p100
      %p102 = scmp.ne.s32.totalorder %s88, %s89
      %p103 = scmp.eq.s32.totalorder %s29, 1
      %p104 = por %p102, %p103
      %p106 = scmp.ne.s32.totalorder %s89, %s105
      %p107 = scmp.eq.s32.totalorder %s29, 0
      %p108 = por %p106, %p107
      %s109 = ssub.s32 %s23, %s30
      %p110 = scmp.eq.s32.totalorder %s109, 0
      %s112 = sadd.s32 %s111, 1
      %s113 = scalar_select %p110, %s111, %s112
      %p116 = pneg %p110
      %p117 = scmp.eq.s32.totalorder %s23, 1
      %p118 = por %p116, %p117
      %p119 = scmp.ne.s32.totalorder %s111, %s114
      %p120 = scmp.eq.s32.totalorder %s23, 0
      %p121 = por %p119, %p120
      %p122 = scmp.ne.s32.totalorder %s111, %s114
      %p123 = scmp.eq.s32.totalorder %s28, 1
      %p124 = por %p122, %p123
      %p125 = scmp.ne.s32.totalorder %s114, %s115
      %p126 = scmp.eq.s32.totalorder %s28, 0
      %p127 = por %p125, %p126
      %p128 = scmp.ne.s32.totalorder %s114, %s115
      %p129 = scmp.eq.s32.totalorder %s29, 1
      %p130 = por %p128, %p129
      %p132 = scmp.ne.s32.totalorder %s115, %s131
      %p133 = scmp.eq.s32.totalorder %s29, 0
      %p134 = por %p132, %p133
      %s135 = ssub.s32 %s23, %s30
      %p136 = scmp.eq.s32.totalorder %s135, 0
      %s138 = sadd.s32 %s137, 1
      %s139 = scalar_select %p136, %s137, %s138
      %p142 = pneg %p136
      %p143 = scmp.eq.s32.totalorder %s23, 1
      %p144 = por %p142, %p143
      %p145 = scmp.ne.s32.totalorder %s137, %s140
      %p146 = scmp.eq.s32.totalorder %s23, 0
      %p147 = por %p145, %p146
      %p148 = scmp.ne.s32.totalorder %s137, %s140
      %p149 = scmp.eq.s32.totalorder %s28, 1
      %p150 = por %p148, %p149
      %p151 = scmp.ne.s32.totalorder %s140, %s141
      %p152 = scmp.eq.s32.totalorder %s28, 0
      %p153 = por %p151, %p152
      %p154 = scmp.ne.s32.totalorder %s140, %s141
      %p155 = scmp.eq.s32.totalorder %s29, 1
      %p156 = por %p154, %p155
      %p158 = scmp.ne.s32.totalorder %s141, %s157
      %p159 = scmp.eq.s32.totalorder %s29, 0
      %p160 = por %p158, %p159
      %p161 = scmp.le.s32.totalorder 1, %s23
      %p162 = scmp.lt.s32.totalorder %s23, 3
      %p163 = pnand %p161, %p162
      %p164 = pneg %p163
      // Predicated region
      $region9: #{tpu_custom_call.1} parent=5 // pred_check
        _
      $region10: #{tpu_custom_call.1} parent=5 // pred_check_branch
        %166 = sbr.rel (%p163) target = $region12
      $region11: #{tpu_custom_call.1} parent=5 // pred_region
        %s167 = ssub.s32 %s23, 1
      $region12: #{tpu_custom_call.1} parent=5 // pred_fallthru
        _
      %p168 = scmp.lt.s32.totalorder %s23, 2
      // Predicated region
      $region13: #{tpu_custom_call.1} parent=5 // pred_check
        %p169 = pneg %p168
      $region14: #{tpu_custom_call.1} parent=5 // pred_check_branch
        %171 = sbr.rel (%p169) target = $region16
      $region15: #{tpu_custom_call.1} parent=5 // pred_region
        // Predicated region
        $region17: #{tpu_custom_call.1} parent=15 // pred_check
          %p172 = pneg %p43
        $region18: #{tpu_custom_call.1} parent=15 // pred_check_branch
          %174 = sbr.rel (%p172) target = $region20
        $region19: #{tpu_custom_call.1} parent=15 // pred_region
          %s175 = sand.u32 %s33, 1
          %s176 = scalar_lea.sflag [#allocation3], %s175
          %s177 = sand.u32 %s33, 1
          %s178 = smul.addr %s177, 8
          %s179 = scalar_lea.vmem [#allocation2], %s178
          %s181 = ssub.s32 128, 128
          %182 = vsyncadd %s176, %s181
          %s183 = smul.addr %s23, 128
          %s184 = scalar_lea.hbm %s0, %s183
          %s186 = sshll.u32 %s179, 4
          %s187 = int_to_ptr.vmem [resolvable:$true] %s186
          %189 = dma.hbm_to_vmem [thread:$0]  %s184, 128, %s187, %s176
        $region20: #{tpu_custom_call.1} parent=15 // pred_fallthru
          _
        // Predicated region
        $region21: #{tpu_custom_call.1} parent=15 // pred_check
          %p190 = pneg %p69
        $region22: #{tpu_custom_call.1} parent=15 // pred_check_branch
          %192 = sbr.rel (%p190) target = $region24
        $region23: #{tpu_custom_call.1} parent=15 // pred_region
          %s193 = sand.u32 %s23, 1
          %s194 = scalar_lea.sflag [#allocation6], %s193
          %s195 = sand.u32 %s59, 1
          %s196 = smul.addr %s195, 8
          %s197 = scalar_lea.vmem [#allocation5], %s196
          %s199 = ssub.s32 128, 128
          %200 = vsyncadd %s194, %s199
          %s201 = smul.addr %s23, 128
          %s202 = scalar_lea.hbm %s1, %s201
          %s204 = sshll.u32 %s197, 4
          %s205 = int_to_ptr.vmem [resolvable:$true] %s204
          %207 = dma.hbm_to_vmem [thread:$0]  %s202, 128, %s205, %s194
        $region24: #{tpu_custom_call.1} parent=15 // pred_fallthru
          _
        // Predicated region
        $region25: #{tpu_custom_call.1} parent=15 // pred_check
          %p208 = pneg %p95
        $region26: #{tpu_custom_call.1} parent=15 // pred_check_branch
          %210 = sbr.rel (%p208) target = $region28
        $region27: #{tpu_custom_call.1} parent=15 // pred_region
          %s211 = sand.u32 %s23, 1
          %s212 = scalar_lea.sflag [#allocation6], %s211
          %s213 = sand.u32 %s85, 1
          %s214 = smul.addr %s213, 8
          %s215 = scalar_lea.vmem [#allocation7], %s214
          %s217 = ssub.s32 128, 128
          %218 = vsyncadd %s212, %s217
          %s219 = smul.addr %s23, 128
          %s220 = scalar_lea.hbm %s2, %s219
          %s222 = sshll.u32 %s215, 4
          %s223 = int_to_ptr.vmem [resolvable:$true] %s222
          %225 = dma.hbm_to_vmem [thread:$0]  %s220, 128, %s223, %s212
        $region28: #{tpu_custom_call.1} parent=15 // pred_fallthru
          _
      $region16: #{tpu_custom_call.1} parent=5 // pred_fallthru
        _
      %p226 = scmp.le.s32.totalorder 1, %s23
      %p227 = scmp.lt.s32.totalorder %s23, 3
      %p228 = pnand %p226, %p227
      %p229 = pneg %p228
      // Predicated region
      $region29: #{tpu_custom_call.1} parent=5 // pred_check
        _
      $region30: #{tpu_custom_call.1} parent=5 // pred_check_branch
        %231 = sbr.rel (%p228) target = $region32
      $region31: #{tpu_custom_call.1} parent=5 // pred_region
        %s232 = ssub.s32 %s23, 1
        %s233 = sand.u32 %s36, 1
        %s234 = scalar_lea.sflag [#allocation3], %s233
        %s235 = sand.u32 %s36, 1
        %s236 = smul.addr %s235, 8
        %s237 = scalar_lea.vmem [#allocation2], %s236
        // Predicated region
        $region33: #{tpu_custom_call.1} parent=31 // pred_check
          %p238 = pneg %p49
        $region34: #{tpu_custom_call.1} parent=31 // pred_check_branch
          %240 = sbr.rel (%p238) target = $region36
        $region35: #{tpu_custom_call.1} parent=31 // pred_region
          %241 = dma.done %s234, 128
        $region36: #{tpu_custom_call.1} parent=31 // pred_fallthru
          _
        %s242 = sand.u32 %s28, 1
        %s243 = scalar_lea.sflag [#allocation6], %s242
        %s244 = sand.u32 %s62, 1
        %s245 = smul.addr %s244, 8
        %s246 = scalar_lea.vmem [#allocation5], %s245
        // Predicated region
        $region37: #{tpu_custom_call.1} parent=31 // pred_check
          %p247 = pneg %p75
        $region38: #{tpu_custom_call.1} parent=31 // pred_check_branch
          %249 = sbr.rel (%p247) target = $region40
        $region39: #{tpu_custom_call.1} parent=31 // pred_region
          %250 = dma.done %s243, 128
        $region40: #{tpu_custom_call.1} parent=31 // pred_fallthru
          _
        %s251 = sand.u32 %s28, 1
        %s252 = scalar_lea.sflag [#allocation6], %s251
        %s253 = sand.u32 %s88, 1
        %s254 = smul.addr %s253, 8
        %s255 = scalar_lea.vmem [#allocation7], %s254
        // Predicated region
        $region41: #{tpu_custom_call.1} parent=31 // pred_check
          %p256 = pneg %p101
        $region42: #{tpu_custom_call.1} parent=31 // pred_check_branch
          %258 = sbr.rel (%p256) target = $region44
        $region43: #{tpu_custom_call.1} parent=31 // pred_region
          %259 = dma.done %s252, 128
        $region44: #{tpu_custom_call.1} parent=31 // pred_fallthru
          _
        %s260 = sand.u32 %s36, 1
        %s261 = scalar_lea.sflag [#allocation3], %s260
        %s262 = sand.u32 %s36, 1
        %s263 = smul.addr %s262, 8
        %s264 = scalar_lea.vmem [#allocation2], %s263
        %p265 = pneg %p49
        %p266 = pneg %p46
        %s267 = sand.u32 %s28, 1
        %s268 = scalar_lea.sflag [#allocation6], %s267
        %s269 = sand.u32 %s62, 1
        %s270 = smul.addr %s269, 8
        %s271 = scalar_lea.vmem [#allocation5], %s270
        %p272 = pneg %p75
        %p273 = pneg %p72
        %s274 = sand.u32 %s28, 1
        %s275 = scalar_lea.sflag [#allocation6], %s274
        %s276 = sand.u32 %s88, 1
        %s277 = smul.addr %s276, 8
        %s278 = scalar_lea.vmem [#allocation7], %s277
        %p279 = pneg %p101
        %p280 = pneg %p98
        %p281 = pneg %p127
        %p282 = pneg %p124
        %s283 = sand.u32 %s114, 1
        %s284 = scalar_lea.sflag [#allocation4], %s283
        %s285 = sand.u32 %s114, 1
        %s286 = scalar_lea.vmem [#allocation8], %s285
        %p287 = pneg %p153
        %p288 = pneg %p150
        %s289 = sand.u32 %s140, 1
        %s290 = scalar_lea.sflag [#allocation10], %s289
        %s291 = sand.u32 %s140, 1
        %s292 = scalar_lea.vmem [#allocation9], %s291
        %v293 = vld [vmem:[%s237] sm:$0xff]
        %v294 = vld [vmem:[%s246] sm:$0xff]
        %v295 = vld [vmem:[%s255] sm:$0xff]
        %vm296 = vcmp.gt.s32.totalorder %v295, 0
        %v297 = vsel %vm296, 1, 0
        %v298 = vcvt.s32.f32 %v297
        %299 = vrot.lane.b32.xlu0 %v298, 1
        %v300 = vpop.permute.xlu0 %299
        %v301 = vlaneseq
        %v302 = vand.u32 %v301, 127
        %vm303 = vcmp.eq.s32.totalorder %v302, 0
        %v304 = vsel %vm303, 1.0, %v300
        %v305 = vsub.f32 0.0, %v293
        %v306 = vmul.f32 %v305, %v294
        %v307 = vmul.f32 %v306, %v304
        %v308 = vrot.slane %v307, 4
        %v309 = vadd.f32 %v307, %v308
        %v310 = vrot.slane %v309, 2
        %v311 = vadd.f32 %v309, %v310
        %v312 = vrot.slane %v311, 1
        %v313 = vadd.f32 %v311, %v312
        %314 = vst [vmem:[%s286] sm:$0x1] %v313
        %v315 = vrot.slane %v304, 4
        %v316 = vadd.f32 %v304, %v315
        %v317 = vrot.slane %v316, 2
        %v318 = vadd.f32 %v316, %v317
        %v319 = vrot.slane %v318, 1
        %v320 = vadd.f32 %v318, %v319
        %321 = vst [vmem:[%s292] sm:$0x1] %v320
        %s322 = sand.u32 %s114, 1
        %s323 = scalar_lea.sflag [#allocation4], %s322
        %s324 = sand.u32 %s114, 1
        %s325 = scalar_lea.vmem [#allocation8], %s324
        %s326 = sand.u32 %s140, 1
        %s327 = scalar_lea.sflag [#allocation10], %s326
        %s328 = sand.u32 %s140, 1
        %s329 = scalar_lea.vmem [#allocation9], %s328
        // Predicated region
        $region45: #{tpu_custom_call.1} parent=31 // pred_check
          %p330 = pneg %p124
        $region46: #{tpu_custom_call.1} parent=31 // pred_check_branch
          %332 = sbr.rel (%p330) target = $region48
        $region47: #{tpu_custom_call.1} parent=31 // pred_region
          %s334 = ssub.s32 16, 16
          %335 = vsyncadd %s323, %s334
          %s336 = smul.addr %s28, 16
          %s337 = scalar_lea.hbm %s3, %s336
          %s339 = sshll.u32 %s325, 4
          %s340 = int_to_ptr.vmem [resolvable:$true] %s339
          %342 = dma.vmem_to_hbm [thread:$0]  %s340, 16, %s337, %s323
        $region48: #{tpu_custom_call.1} parent=31 // pred_fallthru
          _
        // Predicated region
        $region49: #{tpu_custom_call.1} parent=31 // pred_check
          %p343 = pneg %p150
        $region50: #{tpu_custom_call.1} parent=31 // pred_check_branch
          %345 = sbr.rel (%p343) target = $region52
        $region51: #{tpu_custom_call.1} parent=31 // pred_region
          %s347 = ssub.s32 16, 16
          %348 = vsyncadd %s327, %s347
          %s349 = smul.addr %s28, 16
          %s350 = scalar_lea.hbm %s4, %s349
          %s352 = sshll.u32 %s329, 4
          %s353 = int_to_ptr.vmem [resolvable:$true] %s352
          %355 = dma.vmem_to_hbm [thread:$0]  %s353, 16, %s350, %s327
        $region52: #{tpu_custom_call.1} parent=31 // pred_fallthru
          _
      $region32: #{tpu_custom_call.1} parent=5 // pred_fallthru
        _
      %p356 = scmp.le.s32.totalorder 2, %s23
      // Predicated region
      $region53: #{tpu_custom_call.1} parent=5 // pred_check
        %p357 = pneg %p356
      $region54: #{tpu_custom_call.1} parent=5 // pred_check_branch
        %359 = sbr.rel (%p357) target = $region56
      $region55: #{tpu_custom_call.1} parent=5 // pred_region
        %s360 = ssub.s32 %s23, 2
        // Predicated region
        $region57: #{tpu_custom_call.1} parent=55 // pred_check
          %p361 = pneg %p130
        $region58: #{tpu_custom_call.1} parent=55 // pred_check_branch
          %363 = sbr.rel (%p361) target = $region60
        $region59: #{tpu_custom_call.1} parent=55 // pred_region
          %s364 = sand.u32 %s115, 1
          %s365 = scalar_lea.sflag [#allocation4], %s364
          %s366 = sand.u32 %s115, 1
          %s367 = scalar_lea.vmem [#allocation8], %s366
          %368 = dma.done %s365, 16
        $region60: #{tpu_custom_call.1} parent=55 // pred_fallthru
          _
        // Predicated region
        $region61: #{tpu_custom_call.1} parent=55 // pred_check
          %p369 = pneg %p156
        $region62: #{tpu_custom_call.1} parent=55 // pred_check_branch
          %371 = sbr.rel (%p369) target = $region64
        $region63: #{tpu_custom_call.1} parent=55 // pred_region
          %s372 = sand.u32 %s141, 1
          %s373 = scalar_lea.sflag [#allocation10], %s372
          %s374 = sand.u32 %s141, 1
          %s375 = scalar_lea.vmem [#allocation9], %s374
          %376 = dma.done %s373, 16
        $region64: #{tpu_custom_call.1} parent=55 // pred_fallthru
          _
      $region56: #{tpu_custom_call.1} parent=5 // pred_fallthru
        _
    $region6: #{tpu_custom_call.1} parent=1 // loop_footer
      %s27 = sadd.s32 1, %s23
    $region7: #{tpu_custom_call.1} parent=1 // loop_footer_branch
      %22 = sbr.rel target = $region3
    $region8: #{tpu_custom_call.1} parent=1 // loop_exit
      _
    %377 = vsyncpa [#allocation3], 1
    %s378 = scalar_lea.sflag [#allocation3], 1
    %379 = vsyncpa %s378, 1
    %380 = vsyncpa [#allocation6], 1
    %s381 = scalar_lea.sflag [#allocation6], 1
    %382 = vsyncpa %s381, 1
    %383 = vsyncpa [#allocation4], 1
    %s384 = scalar_lea.sflag [#allocation4], 1
    %385 = vsyncpa %s384, 1
    %386 = vsyncpa [#allocation10], 1
    %s387 = scalar_lea.sflag [#allocation10], 1
    %388 = vsyncpa %s387, 1

</llo_original>
